<compile_context>
chip_gen: v5e
topology: v5e:2x2
jax: 0.10.0
libtpu: 0.0.40
codegen_flags: <defaults>
</compile_context>

<pallas_src>
import functools

import jax
import jax.numpy as jnp
from jax.experimental import pallas as pl
from jax.experimental.pallas import tpu as pltpu


def _round_up(a, b):
    return ((a + b - 1) // b) * b


def _cdiv(a, b):
    return (a + b - 1) // b


def _sublane(dtype):
    # Minimum sublane multiple for the vreg tiling of this dtype.
    return {4: 8, 2: 16, 1: 32}.get(jnp.dtype(dtype).itemsize, 8)


# ----------------------------- fused single-read kernel -------------------------------
def _fused_norm_kernel(x_ref, o_ref, *, inv_n, eps):
    xf = x_ref[...].astype(jnp.float32)                       # (r_blk, S)
    mean = jnp.sum(xf, axis=-1, keepdims=True) * inv_n
    centered = xf - mean
    var = jnp.sum(centered * centered, axis=-1, keepdims=True) * inv_n  # centered: stable
    o_ref[...] = (centered * jax.lax.rsqrt(var + eps)).astype(o_ref.dtype)


# ----------------------------- pass 1: per-row sum / sumsq ----------------------------
def _row_stats_kernel(x_ref, sum_ref, sq_ref, sum_acc, sq_acc, *, s_rem):
    s = pl.program_id(1)

    @pl.when(s == 0)
    def _():
        sum_acc[...] = jnp.zeros_like(sum_acc)
        sq_acc[...] = jnp.zeros_like(sq_acc)

    xf = x_ref[...].astype(jnp.float32)
    if s_rem:
        # S is not a multiple of s_blk: mask the tail lanes of the LAST s-block.
        # Boundary reads are NOT guaranteed zero, so mask before accumulating.
        col = jax.lax.broadcasted_iota(jnp.int32, xf.shape, 1)
        limit = jnp.where(s == pl.num_programs(1) - 1, s_rem, xf.shape[1])
        xf = jnp.where(col < limit, xf, 0.0)
    sum_acc[...] += jnp.sum(xf, axis=-1, keepdims=True)
    sq_acc[...] += jnp.sum(xf * xf, axis=-1, keepdims=True)

    @pl.when(s == pl.num_programs(1) - 1)
    def _():
        sum_ref[...] = sum_acc[...]
        sq_ref[...] = sq_acc[...]


# ----------------------------- pass 2: normalize ---------------------------------------
def _apply_kernel(x_ref, mean_ref, rstd_ref, o_ref):
    xf = x_ref[...].astype(jnp.float32)
    o_ref[...] = ((xf - mean_ref[...]) * rstd_ref[...]).astype(o_ref.dtype)


# ----------------------------- block-size selection ------------------------------------
_FUSED_VMEM_BUDGET = 12 * 1024 * 1024   # tile + temps estimate; 32 MiB limit requested
_FUSED_VMEM_LIMIT = 32 * 1024 * 1024


def _pick_r_blk(R, r_tile, sub):
    """Row block: a multiple of the sublane tile, or the full R. Split small R in two
    blocks so both TensorCores get work on v7x."""
    if R > r_tile:
        return max(sub, (r_tile // sub) * sub)
    if R >= 2 * sub:
        return _round_up(_cdiv(R, 2), sub)
    return R


def _fused_row_block(R, S, dtype, r_tile=256):
    """Largest legal row block for the fused path, or None if a row doesn't fit."""
    sub = _sublane(dtype)
    itemsize = jnp.dtype(dtype).itemsize
    # 2x double-buffered input + 2x double-buffered output + ~4 f32-sized temporaries.
    per_row = S * (4 * itemsize + 16)
    if per_row <= 0:
        return None
    max_rows = _FUSED_VMEM_BUDGET // per_row
    if max_rows < 1 or max_rows < min(R, sub):
        return None
    r_blk = min(R, r_tile, max_rows)
    if r_blk < R:
        r_blk = (r_blk // sub) * sub
        if r_blk == 0:
            return None
    elif R >= 2 * sub:
        # Whole R fits one block: split into two row blocks for v7x megacore.
        r_blk = _round_up(_cdiv(R, 2), sub)
    return r_blk


# ----------------------------- pallas_call wrappers -------------------------------------
def _fused_normalize(x2, r_blk, *, eps):
    R, S = x2.shape
    num_r = _cdiv(R, r_blk)
    return pl.pallas_call(
        functools.partial(_fused_norm_kernel, inv_n=1.0 / float(S), eps=float(eps)),
        out_shape=jax.ShapeDtypeStruct((R, S), x2.dtype),
        grid_spec=pltpu.PrefetchScalarGridSpec(
            num_scalar_prefetch=0,
            grid=(num_r,),
            in_specs=[pl.BlockSpec((r_blk, S), lambda r: (r, 0))],
            out_specs=pl.BlockSpec((r_blk, S), lambda r: (r, 0)),
        ),
        compiler_params=pltpu.CompilerParams(
            dimension_semantics=("parallel",),
            vmem_limit_bytes=_FUSED_VMEM_LIMIT),
    )(x2)


def _row_stats(x2, *, r_tile=128, s_tile=4096):
    """Per-row (sum, sum-of-squares) in f32, each of shape (R, 1)."""
    R, S = x2.shape
    sub = _sublane(x2.dtype)
    r_blk = _pick_r_blk(R, r_tile, sub)
    if S <= s_tile:
        s_blk, s_rem = S, 0                      # full row in one block, no masking
    else:
        s_blk = max(128, (s_tile // 128) * 128)
        s_rem = S % s_blk
    num_r, num_s = _cdiv(R, r_blk), _cdiv(S, s_blk)
    return pl.pallas_call(
        functools.partial(_row_stats_kernel, s_rem=s_rem),
        out_shape=(
            jax.ShapeDtypeStruct((R, 1), jnp.float32),
            jax.ShapeDtypeStruct((R, 1), jnp.float32),
        ),
        grid_spec=pltpu.PrefetchScalarGridSpec(
            num_scalar_prefetch=0,
            grid=(num_r, num_s),
            in_specs=[pl.BlockSpec((r_blk, s_blk), lambda r, s: (r, s))],
            out_specs=(
                pl.BlockSpec((r_blk, 1), lambda r, s: (r, 0)),
                pl.BlockSpec((r_blk, 1), lambda r, s: (r, 0)),
            ),
            scratch_shapes=[
                pltpu.VMEM((r_blk, 1), jnp.float32),
                pltpu.VMEM((r_blk, 1), jnp.float32),
            ],
        ),
        compiler_params=pltpu.CompilerParams(
            dimension_semantics=("parallel", "arbitrary")),
    )(x2)


def _row_apply(x2, mean, rstd, *, r_tile=128, s_tile=2048):
    """y[r, s] = (x[r, s] - mean[r]) * rstd[r]; output written directly at (R, S)."""
    R, S = x2.shape
    sub = _sublane(x2.dtype)
    r_blk = _pick_r_blk(R, r_tile, sub)
    s_blk = S if S <= s_tile else max(128, (s_tile // 128) * 128)
    num_r, num_s = _cdiv(R, r_blk), _cdiv(S, s_blk)
    return pl.pallas_call(
        _apply_kernel,
        out_shape=jax.ShapeDtypeStruct((R, S), x2.dtype),
        grid_spec=pltpu.PrefetchScalarGridSpec(
            num_scalar_prefetch=0,
            grid=(num_r, num_s),
            in_specs=[
                pl.BlockSpec((r_blk, s_blk), lambda r, s: (r, s)),
                pl.BlockSpec((r_blk, 1), lambda r, s: (r, 0)),
                pl.BlockSpec((r_blk, 1), lambda r, s: (r, 0)),
            ],
            out_specs=pl.BlockSpec((r_blk, s_blk), lambda r, s: (r, s)),
        ),
        compiler_params=pltpu.CompilerParams(
            dimension_semantics=("parallel", "parallel")),
    )(x2, mean, rstd)


# ----------------------------- row-wise normalization -----------------------------------
def _normalize_rows(x2, *, eps, s_tile=4096, r_tile=128, allow_fused=True):
    """Normalize each row of x2 [R, S] to zero mean / unit variance (biased var)."""
    R, S = x2.shape
    if allow_fused:
        r_blk = _fused_row_block(R, S, x2.dtype)
        if r_blk is not None:
            return _fused_normalize(x2, r_blk, eps=eps)
    # Two-pass fallback. Note: E[x^2] - mean^2 in f32 can cancel for |mean| >> std;
    # the fused path (used whenever rows fit VMEM) uses the centered form instead.
    row_sum, row_sq = _row_stats(x2, r_tile=r_tile, s_tile=s_tile)
    inv_n = 1.0 / float(S)
    mean = row_sum * inv_n
    var = jnp.maximum(row_sq * inv_n - mean * mean, 0.0)
    rstd = jax.lax.rsqrt(var + eps)
    return _row_apply(x2, mean, rstd, r_tile=r_tile, s_tile=min(s_tile, 2048))


# ----------------------------- module-level wrappers -------------------------------------
def instance_norm3d(x, *, eps=1e-5, s_tile=4096, r_tile=128, allow_fused=True):
    B, C, D, H, W = x.shape
    x2 = x.reshape(B * C, D * H * W)            # rows = (b, c); lanes = spatial
    y2 = _normalize_rows(x2, eps=eps, s_tile=s_tile, r_tile=r_tile,
                         allow_fused=allow_fused)
    return y2.reshape(x.shape)


def batch_norm3d(x, *, eps=1e-5, s_tile=4096, r_tile=128):
    # Training-mode batch statistics (per channel, over B and spatial dims).
    # No transposes: per-(b,c) sums from the streaming kernel are merged across B in a
    # tiny JAX epilogue, then broadcast back to (B*C, 1) for the apply pass.
    B, C, D, H, W = x.shape
    S = D * H * W
    x2 = x.reshape(B * C, S)
    row_sum, row_sq = _row_stats(x2, r_tile=r_tile, s_tile=s_tile)
    ch_sum = jnp.sum(row_sum.reshape(B, C), axis=0)
    ch_sq = jnp.sum(row_sq.reshape(B, C), axis=0)
    inv_n = 1.0 / float(B * S)
    mean_c = ch_sum * inv_n
    var_c = jnp.maximum(ch_sq * inv_n - mean_c * mean_c, 0.0)
    rstd_c = jax.lax.rsqrt(var_c + eps)
    mean = jnp.broadcast_to(mean_c[None, :], (B, C)).reshape(B * C, 1)
    rstd = jnp.broadcast_to(rstd_c[None, :], (B, C)).reshape(B * C, 1)
    y2 = _row_apply(x2, mean, rstd, r_tile=r_tile, s_tile=min(s_tile, 2048))
    return y2.reshape(x.shape)


def normalization(x, norm_type="instance", *, eps=1e-5, s_tile=4096, r_tile=128,
                  allow_fused=True):
    """Forward of the PyTorch `Normalization` module."""
    if jnp.iscomplexobj(x):
        re = normalization(jnp.real(x), norm_type, eps=eps, s_tile=s_tile,
                           r_tile=r_tile, allow_fused=allow_fused)
        im = normalization(jnp.imag(x), norm_type, eps=eps, s_tile=s_tile,
                           r_tile=r_tile, allow_fused=allow_fused)
        return jax.lax.complex(re, im)
    if norm_type == "none":
        return x                                    # nn.Identity
    if norm_type == "instance":
        return instance_norm3d(x, eps=eps, s_tile=s_tile, r_tile=r_tile,
                               allow_fused=allow_fused)
    if norm_type == "batch":
        return batch_norm3d(x, eps=eps, s_tile=s_tile, r_tile=r_tile)
    raise ValueError("Invalid normalization type: %s" % norm_type)


# ----------------------------- pure-JAX references ---------------------------------------
def _instance_norm_ref(x, eps=1e-5):
    mean = jnp.mean(x, axis=(2, 3, 4), keepdims=True)
    var = jnp.var(x, axis=(2, 3, 4), keepdims=True)
    return (x - mean) / jnp.sqrt(var + eps)


def _batch_norm_ref(x, eps=1e-5):
    mean = jnp.mean(x, axis=(0, 2, 3, 4), keepdims=True)
    var = jnp.var(x, axis=(0, 2, 3, 4), keepdims=True)
    return (x - mean) / jnp.sqrt(var + eps)


if __name__ == "__main__":
    key = jax.random.PRNGKey(0)
    k1, k2, k3 = jax.random.split(key, 3)

    # Shape 1: S = 4*6*10 = 240 (NOT a multiple of 128), R = B*C = 8.
    x = jax.random.normal(k1, (2, 4, 4, 6, 10), dtype=jnp.float32)
    ref_inst = _instance_norm_ref(x)
    ref_bn = _batch_norm_ref(x)

    # instance norm — fused single-read path
    out = jax.block_until_ready(normalization(x, "instance"))
    assert out.shape == x.shape
    assert jnp.allclose(out, ref_inst, atol=1e-3, rtol=1e-3), "instance (fused) mismatch"

    # instance norm — forced two-pass path with small s-tile: exercises in-kernel
    # tail-lane masking (240 = 128 + 112) without any padding or output slicing.
    out = jax.block_until_ready(
        normalization(x, "instance", s_tile=128, allow_fused=False))
    assert jnp.allclose(out, ref_inst, atol=1e-3, rtol=1e-3), "instance (2-pass) mismatch"

    # batch norm (training-mode batch stats), default and small-tile variants
    out = jax.block_until_ready(normalization(x, "batch"))
    assert jnp.allclose(out, ref_bn, atol=1e-3, rtol=1e-3), "batch norm mismatch"
    out = jax.block_until_ready(normalization(x, "batch", s_tile=128))
    assert jnp.allclose(out, ref_bn, atol=1e-3, rtol=1e-3), "batch norm (tiled) mismatch"

    # identity
    assert jnp.allclose(normalization(x, "none"), x), "identity mismatch"

    # complex path: normalize real and imaginary parts independently
    xc = x + 1j * jax.random.normal(k2, x.shape, dtype=jnp.float32)
    out_c = jax.block_until_ready(normalization(xc, "instance"))
    ref_c = _instance_norm_ref(jnp.real(xc)) + 1j * _instance_norm_ref(jnp.imag(xc))
    assert jnp.allclose(out_c, ref_c, atol=1e-3, rtol=1e-3), "complex path mismatch"

    # Shape 2: ragged rows (R = 25, split into 16 + 9) and ragged lanes (S = 195).
    x2 = jax.random.normal(k3, (5, 5, 3, 5, 13), dtype=jnp.float32)
    ref2 = _instance_norm_ref(x2)
    out2 = jax.block_until_ready(normalization(x2, "instance"))
    assert jnp.allclose(out2, ref2, atol=1e-3, rtol=1e-3), "instance (ragged fused) mismatch"
    out2 = jax.block_until_ready(
        normalization(x2, "instance", s_tile=128, allow_fused=False))
    assert jnp.allclose(out2, ref2, atol=1e-3, rtol=1e-3), "instance (ragged 2-pass) mismatch"

    print("KERNEL_OK")
</pallas_src>

<mosaic_0001>
module attributes {stable_mosaic.version = 11 : i64} {
  func.func @_fused_norm_kernel(%arg0: i32, %arg1: memref<8x240xf32, #tpu.memory_space<vmem>>, %arg2: memref<8x240xf32, #tpu.memory_space<vmem>>) attributes {dimension_semantics = [#tpu.dimension_semantics<parallel>], iteration_bounds = array<i64: 1>, scalar_prefetch = 0 : i64, scratch_operands = 0 : i64, tpu.core_type = #tpu.core_type<tc>, window_params = [{transform_indices = @transform_0, window_bounds = array<i64: 8, 240>}, {transform_indices = @transform_1, window_bounds = array<i64: 8, 240>}]} {
    %c0 = arith.constant 0 : index
    %c0_0 = arith.constant 0 : index
    %0 = vector.load %arg1[%c0, %c0_0] : memref<8x240xf32, #tpu.memory_space<vmem>>, vector<8x240xf32>
    %cst = arith.constant dense<0.000000e+00> : vector<8xf32>
    %1 = vector.multi_reduction <add>, %0, %cst [1] : vector<8x240xf32> to vector<8xf32>
    %2 = vector.shape_cast %1 : vector<8xf32> to vector<8x1xf32>
    %cst_1 = arith.constant 0.00416666688 : f32
    %3 = vector.broadcast %cst_1 : f32 to vector<8x1xf32>
    %4 = arith.mulf %2, %3 : vector<8x1xf32>
    %5 = vector.broadcast %4 : vector<8x1xf32> to vector<8x240xf32>
    %6 = arith.subf %0, %5 : vector<8x240xf32>
    %7 = arith.mulf %6, %6 : vector<8x240xf32>
    %cst_2 = arith.constant dense<0.000000e+00> : vector<8xf32>
    %8 = vector.multi_reduction <add>, %7, %cst_2 [1] : vector<8x240xf32> to vector<8xf32>
    %9 = vector.shape_cast %8 : vector<8xf32> to vector<8x1xf32>
    %cst_3 = arith.constant 0.00416666688 : f32
    %10 = vector.broadcast %cst_3 : f32 to vector<8x1xf32>
    %11 = arith.mulf %9, %10 : vector<8x1xf32>
    %cst_4 = arith.constant 9.99999974E-6 : f32
    %12 = vector.broadcast %cst_4 : f32 to vector<8x1xf32>
    %13 = arith.addf %11, %12 : vector<8x1xf32>
    %14 = math.rsqrt %13 : vector<8x1xf32>
    %15 = vector.broadcast %14 : vector<8x1xf32> to vector<8x240xf32>
    %16 = arith.mulf %6, %15 : vector<8x240xf32>
    %c0_5 = arith.constant 0 : index
    %c0_6 = arith.constant 0 : index
    %17 = vector.load %arg2[%c0_5, %c0_6] : memref<8x240xf32, #tpu.memory_space<vmem>>, vector<8x240xf32>
    tpu.vector_store %arg2[%c0_5, %c0_6], %16 {strides = array<i32>} : memref<8x240xf32, #tpu.memory_space<vmem>>, vector<8x240xf32>,
    return
  }
  func.func @transform_0(%arg0: i32) -> (i32, i32) {
    %c0_i32 = arith.constant 0 : i32
    %c0_i32_0 = arith.constant 0 : i32
    return %arg0, %c0_i32 : i32, i32
  }
  func.func @transform_1(%arg0: i32) -> (i32, i32) {
    %c0_i32 = arith.constant 0 : i32
    %c0_i32_0 = arith.constant 0 : i32
    return %arg0, %c0_i32 : i32, i32
  }
}

</mosaic_0001>

<llo_original>
// kernel: tpu_custom_call.1
$region0: #{tpu_custom_call.1}
  #allocation0 [shape = 'u32[]', space=smem, size = 0x4, offset = 0x4, fixed_abs, tag = 'smem constant byte address 0x4 - core index']
  #allocation1 [shape = 'u32[72,128]{1,0:T(1,128)}', space=vmem, size = 0x9000, scoped, tag = 'internal scratch']
  %s0 = inlined_call_operand.hbm [shape: f32[8,240], index: 0, kind: input, shape index: {}]
  %s1 = inlined_call_operand.hbm [shape: f32[8,240], index: 1, kind: output, shape index: {}]
  %s2 = sld [smem:[#allocation0]]
  $region18: #{tpu_custom_call.1} parent=0
    _
  %s4 = ssub.s32 1, %s2
  %s5 = scalar_select 0, %s4, %s2
  $region1: #{tpu_custom_call.1} parent=0
    #allocation2 [shape = 'u8[8192]{0}', space=vmem, size = 0x2000, scoped, tag = 'input window, operand 0, single buffered']
    #allocation3 [shape = 's32[1]{0}', space=sflag, size = 0x4, scoped, tag = 'scoped memory for tpu_custom_call.1']
    #allocation4 [shape = 's32[1]{0}', space=sflag, size = 0x4, scoped, tag = 'scoped memory for tpu_custom_call.1']
    #allocation5 [shape = 'u8[8192]{0}', space=vmem, size = 0x2000, scoped, tag = 'output window, operand 0, single buffered']
    %6 = vsyncpa [#allocation3], 0
    %7 = vsyncpa [#allocation4], 0
    // Predicated region
    $region2: #{tpu_custom_call.1} parent=1 // pred_check
      _
    $region3: #{tpu_custom_call.1} parent=1 // pred_check_branch
      %9 = sbr.rel (0) target = $region5
    $region4: #{tpu_custom_call.1} parent=1 // pred_region
      %11 = vsyncadd [#allocation3], 0
      %s13 = sshll.u32 %s0, 4
      %s14 = int_to_ptr.hbm [resolvable:$true] %s13
      %s15 = sshll.u32 [#allocation2], 4
      %s16 = int_to_ptr.vmem [resolvable:$true] %s15
      %18 = dma.hbm_to_vmem [thread:$0]  %s14, 256, %s16, [#allocation3]
    $region5: #{tpu_custom_call.1} parent=1 // pred_fallthru
      _
    // Predicated region
    $region6: #{tpu_custom_call.1} parent=1 // pred_check
      _
    $region7: #{tpu_custom_call.1} parent=1 // pred_check_branch
      %20 = sbr.rel (0) target = $region9
    $region8: #{tpu_custom_call.1} parent=1 // pred_region
      %22 = dma.done [#allocation3], 256
    $region9: #{tpu_custom_call.1} parent=1 // pred_fallthru
      _
    %v23 = vld [vmem:[#allocation2] sm:$0xff]
    %v24 = vld [vmem:[#allocation2 + $0x8] sm:$0xff]
    %vm25 = vcmask 916480
    %v26 = vsel %vm25, %v24, 0.0
    %v27 = vadd.f32 %v23, %v26
    %28 = vadd.xlane.f32.xlu0 %v27
    %v29 = vpop.xlane.xlu0 %28
    %v30 = vmul.f32 %v29, 0.004166667
    %v31 = vsub.f32 %v23, %v30
    %v32 = vsub.f32 %v24, %v30
    %v33 = vmul.f32 %v31, %v31
    %v34 = vmul.f32 %v32, %v32
    %v35 = vsel %vm25, %v34, 0.0
    %v36 = vadd.f32 %v33, %v35
    %37 = vadd.xlane.f32.xlu0 %v36
    %v38 = vpop.xlane.xlu0 %37
    %v39 = vmul.f32 %v38, 0.004166667
    %v40 = vadd.f32 %v39, 1e-05
    %v41 = vrsqrt.pop %v40
    %v42 = vmul.f32 %v41, %v40
    %v43 = vmul.f32 %v42, %v41
    %v44 = vmul.f32 0.5, %v43
    %v45 = vsub.f32 1.5, %v44
    %v46 = vmul.f32 %v41, %v45
    %vm47 = vweird.f32 %v40
    %vm48 = vweird.f32 %v41
    %vm49 = vmor %vm47, %vm48
    %v50 = vsel %vm49, %v41, %v46
    %v51 = vmul.f32 %v31, %v50
    %v52 = vmul.f32 %v32, %v50
    %53 = vst [vmem:[#allocation5] sm:$0xff] %v51
    %54 = vst.msk [vmem:[#allocation5 + $0x8] sm:$0xff] %vm25, %v52
    // Predicated region
    $region10: #{tpu_custom_call.1} parent=1 // pred_check
      _
    $region11: #{tpu_custom_call.1} parent=1 // pred_check_branch
      %56 = sbr.rel (0) target = $region13
    $region12: #{tpu_custom_call.1} parent=1 // pred_region
      %58 = vsyncadd [#allocation4], 0
      %s60 = sshll.u32 [#allocation5], 4
      %s61 = int_to_ptr.vmem [resolvable:$true] %s60
      %s62 = sshll.u32 %s1, 4
      %s63 = int_to_ptr.hbm [resolvable:$true] %s62
      %65 = dma.vmem_to_hbm [thread:$0]  %s61, 256, %s63, [#allocation4]
    $region13: #{tpu_custom_call.1} parent=1 // pred_fallthru
      _
    // Predicated region
    $region14: #{tpu_custom_call.1} parent=1 // pred_check
      _
    $region15: #{tpu_custom_call.1} parent=1 // pred_check_branch
      %67 = sbr.rel (0) target = $region17
    $region16: #{tpu_custom_call.1} parent=1 // pred_region
      %69 = dma.done [#allocation4], 256
    $region17: #{tpu_custom_call.1} parent=1 // pred_fallthru
      _
    %70 = vsyncpa [#allocation3], 1
    %71 = vsyncpa [#allocation4], 1

</llo_original>
